<compile_context>
chip_gen: v7x
topology: tpu7x:2x2x1
jax: 0.10.0
libtpu: 0.0.40
codegen_flags: <defaults>
</compile_context>

<pallas_src>
import functools

import jax
import jax.numpy as jnp
from jax import lax
from jax.experimental import pallas as pl
from jax.experimental.pallas import tpu as pltpu  # noqa: F401  (TPU backend)

_LANE = 128      # lane (last-dim) granularity
_SUBLANE = 8     # sublane (second-to-last dim) granularity


def _round_up(n, m):
    return ((n + m - 1) // m) * m


def _fused_mlp_kernel(x_ref, prew_ref, preb_ref, bw_ref, bb_ref,
                      postw_ref, postb_ref, out_ref, hid_ref):
    """out = post( relu-blocks( pre(x) ) ); hid[i] = input of block i."""
    num_blocks = bw_ref.shape[0]

    # pre: y = x @ W_pre + b_pre  (MXU, f32 accumulation; bias is a (1, H) row)
    y = jnp.dot(x_ref[...], prew_ref[...], preferred_element_type=jnp.float32)
    y = y + preb_ref[...]

    # blocks: record hidden state, then y = relu(y @ W_i + b_i).
    # num_blocks is static -> fully unrolled; bb_ref[i] is already (1, H), so the
    # bias add broadcasts directly (no per-iteration broadcast materialization).
    def body(i, y):
        hid_ref[i] = y.astype(hid_ref.dtype)
        z = jnp.dot(y, bw_ref[i], preferred_element_type=jnp.float32)
        z = jnp.maximum(z + bb_ref[i], 0.0)
        return z

    y = lax.fori_loop(0, num_blocks, body, y, unroll=True)

    # post
    out = jnp.dot(y, postw_ref[...], preferred_element_type=jnp.float32)
    out_ref[...] = (out + postb_ref[...]).astype(out_ref.dtype)


def model_block_forward(x, params, return_hidden_states=False):
    """Mirrors Model_BLOCK.forward exactly, fused into one Pallas kernel."""
    M, K = x.shape
    pre_w, pre_b = params["pre_w"], params["pre_b"]
    post_w, post_b = params["post_w"], params["post_b"]
    blocks = params["blocks"]
    assert len(blocks) >= 1
    H = pre_w.shape[1]
    N = post_w.shape[1]
    nb = len(blocks)

    # Lane/sublane-dense padding (zero padding is exact for linear+relu chains).
    Mp = _round_up(M, _SUBLANE)
    Kp = _round_up(K, _LANE)
    Hp = _round_up(H, _LANE)
    Np = _round_up(N, _LANE)

    act_dtype = x.dtype
    f32 = jnp.float32

    x_p = jnp.zeros((Mp, Kp), act_dtype).at[:M, :K].set(x)
    prew_p = jnp.zeros((Kp, Hp), f32).at[:K, :H].set(pre_w)
    preb_p = jnp.zeros((1, Hp), f32).at[0, :H].set(pre_b)

    blk_w = jnp.stack([w for (w, _) in blocks])          # [nb, H, H]
    blk_b = jnp.stack([b for (_, b) in blocks])          # [nb, H]
    blkw_p = jnp.zeros((nb, Hp, Hp), f32).at[:, :H, :H].set(blk_w)
    blkb_p = jnp.zeros((nb, 1, Hp), f32).at[:, 0, :H].set(blk_b)

    postw_p = jnp.zeros((Hp, Np), f32).at[:H, :N].set(post_w)
    postb_p = jnp.zeros((1, Np), f32).at[0, :N].set(post_b)

    out_p, hid_p = pl.pallas_call(
        _fused_mlp_kernel,
        out_shape=(
            jax.ShapeDtypeStruct((Mp, Np), act_dtype),        # final output
            jax.ShapeDtypeStruct((nb, Mp, Hp), act_dtype),    # stacked hidden states
        ),
        in_specs=[
            pl.BlockSpec((Mp, Kp), lambda: (0, 0)),
            pl.BlockSpec((Kp, Hp), lambda: (0, 0)),
            pl.BlockSpec((1, Hp), lambda: (0, 0)),
            pl.BlockSpec((nb, Hp, Hp), lambda: (0, 0, 0)),
            pl.BlockSpec((nb, 1, Hp), lambda: (0, 0, 0)),
            pl.BlockSpec((Hp, Np), lambda: (0, 0)),
            pl.BlockSpec((1, Np), lambda: (0, 0)),
        ],
        out_specs=(
            pl.BlockSpec((Mp, Np), lambda: (0, 0)),
            pl.BlockSpec((nb, Mp, Hp), lambda: (0, 0, 0)),
        ),
    )(x_p, prew_p, preb_p, blkw_p, blkb_p, postw_p, postb_p)

    out = out_p[:M, :N]
    if return_hidden_states:
        hidden = [hid_p[i, :M, :H] for i in range(nb)]
        return out, hidden
    return out


def init_params(key, in_features, hidden, out_features, num_blocks):
    keys = jax.random.split(key, 2 * (num_blocks + 2))
    k = iter(keys)
    scale = 0.05

    def lin(kw, kb, fan_in, fan_out):
        w = scale * jax.random.normal(kw, (fan_in, fan_out), jnp.float32)
        b = scale * jax.random.normal(kb, (fan_out,), jnp.float32)
        return w, b

    pre_w, pre_b = lin(next(k), next(k), in_features, hidden)
    blocks = [lin(next(k), next(k), hidden, hidden) for _ in range(num_blocks)]
    post_w, post_b = lin(next(k), next(k), hidden, out_features)
    return {
        "pre_w": pre_w, "pre_b": pre_b,
        "blocks": blocks,
        "post_w": post_w, "post_b": post_b,
    }


def reference_forward(x, params, return_hidden_states=False):
    # Pure-JAX reference for correctness checking.
    x = x @ params["pre_w"] + params["pre_b"]
    o = []
    y = x
    for (w, b) in params["blocks"]:
        o.append(y)
        y = jnp.maximum(y @ w + b, 0.0)
    out = y @ params["post_w"] + params["post_b"]
    if return_hidden_states:
        return out, o
    return out


if __name__ == "__main__":
    # TODO(synk): CheckpointBlock only changes backward-pass recomputation; forward is identity-wrapped.
    batch, in_features, hidden, out_features, num_blocks = 8, 32, 128, 32, 3

    key = jax.random.PRNGKey(0)
    kx, kp = jax.random.split(key)
    x = jax.random.normal(kx, (batch, in_features), jnp.float32)
    params = init_params(kp, in_features, hidden, out_features, num_blocks)

    out, hidden_states = model_block_forward(x, params, return_hidden_states=True)
    out = jax.block_until_ready(out)
    hidden_states = [jax.block_until_ready(h) for h in hidden_states]

    ref_out, ref_hidden = reference_forward(x, params, return_hidden_states=True)
    assert out.shape == (batch, out_features)
    assert len(hidden_states) == num_blocks
    assert jnp.allclose(out, ref_out, atol=1e-5, rtol=1e-5)
    for h, rh in zip(hidden_states, ref_hidden):
        assert h.shape == (batch, hidden)
        assert jnp.allclose(h, rh, atol=1e-5, rtol=1e-5)

    # Also exercise the non-hidden-states path.
    out2 = jax.block_until_ready(model_block_forward(x, params))
    assert jnp.allclose(out2, ref_out, atol=1e-5, rtol=1e-5)

    print("KERNEL_OK")
</pallas_src>

<mosaic_0001>
module attributes {stable_mosaic.version = 11 : i64} {
  func.func @_fused_mlp_kernel(%arg0: memref<8x128xf32, #tpu.memory_space<vmem>>, %arg1: memref<128x128xf32, #tpu.memory_space<vmem>>, %arg2: memref<1x128xf32, #tpu.memory_space<vmem>>, %arg3: memref<3x128x128xf32, #tpu.memory_space<vmem>>, %arg4: memref<3x1x128xf32, #tpu.memory_space<vmem>>, %arg5: memref<128x128xf32, #tpu.memory_space<vmem>>, %arg6: memref<1x128xf32, #tpu.memory_space<vmem>>, %arg7: memref<8x128xf32, #tpu.memory_space<vmem>>, %arg8: memref<3x8x128xf32, #tpu.memory_space<vmem>>) attributes {dimension_semantics = [], scalar_prefetch = 0 : i64, scratch_operands = 0 : i64, tpu.core_type = #tpu.core_type<tc>} {
    %c0 = arith.constant 0 : index
    %c0_0 = arith.constant 0 : index
    %0 = vector.load %arg0[%c0, %c0_0] : memref<8x128xf32, #tpu.memory_space<vmem>>, vector<8x128xf32>
    %c0_1 = arith.constant 0 : index
    %c0_2 = arith.constant 0 : index
    %1 = vector.load %arg1[%c0_1, %c0_2] : memref<128x128xf32, #tpu.memory_space<vmem>>, vector<128x128xf32>
    %cst = arith.constant dense<0.000000e+00> : vector<8x128xf32>
    %2 = tpu.matmul %0, %1, %cst {dimension_numbers = #tpu.dot_dimension_numbers<[1], [0], [0], [1], [0, 0, 1, 1], [], []>} : vector<8x128xf32>, vector<128x128xf32>, vector<8x128xf32> -> vector<8x128xf32>
    %c0_3 = arith.constant 0 : index
    %c0_4 = arith.constant 0 : index
    %3 = vector.load %arg2[%c0_3, %c0_4] : memref<1x128xf32, #tpu.memory_space<vmem>>, vector<1x128xf32>
    %4 = vector.broadcast %3 : vector<1x128xf32> to vector<8x128xf32>
    %5 = arith.addf %2, %4 : vector<8x128xf32>
    %c0_i32 = arith.constant 0 : i32
    %6 = arith.index_cast %c0_i32 : i32 to index
    %c0_5 = arith.constant 0 : index
    %c0_6 = arith.constant 0 : index
    %7 = vector.load %arg8[%6, %c0_5, %c0_6] : memref<3x8x128xf32, #tpu.memory_space<vmem>>, vector<1x8x128xf32>
    %8 = vector.shape_cast %7 : vector<1x8x128xf32> to vector<8x128xf32>
    %9 = vector.shape_cast %5 : vector<8x128xf32> to vector<1x8x128xf32>
    tpu.vector_store %arg8[%6, %c0_5, %c0_6], %9 {strides = array<i32>} : memref<3x8x128xf32, #tpu.memory_space<vmem>>, vector<1x8x128xf32>,
    %10 = arith.index_cast %c0_i32 : i32 to index
    %c0_7 = arith.constant 0 : index
    %c0_8 = arith.constant 0 : index
    %11 = vector.load %arg3[%10, %c0_7, %c0_8] : memref<3x128x128xf32, #tpu.memory_space<vmem>>, vector<1x128x128xf32>
    %12 = vector.shape_cast %11 : vector<1x128x128xf32> to vector<128x128xf32>
    %cst_9 = arith.constant dense<0.000000e+00> : vector<8x128xf32>
    %13 = tpu.matmul %5, %12, %cst_9 {dimension_numbers = #tpu.dot_dimension_numbers<[1], [0], [0], [1], [0, 0, 1, 1], [], []>} : vector<8x128xf32>, vector<128x128xf32>, vector<8x128xf32> -> vector<8x128xf32>
    %14 = arith.index_cast %c0_i32 : i32 to index
    %c0_10 = arith.constant 0 : index
    %c0_11 = arith.constant 0 : index
    %15 = vector.load %arg4[%14, %c0_10, %c0_11] : memref<3x1x128xf32, #tpu.memory_space<vmem>>, vector<1x1x128xf32>
    %16 = vector.shape_cast %15 : vector<1x1x128xf32> to vector<1x128xf32>
    %17 = vector.broadcast %16 : vector<1x128xf32> to vector<8x128xf32>
    %18 = arith.addf %13, %17 : vector<8x128xf32>
    %cst_12 = arith.constant 0.000000e+00 : f32
    %19 = vector.broadcast %cst_12 : f32 to vector<8x128xf32>
    %20 = arith.maximumf %18, %19 : vector<8x128xf32>
    %c1_i32 = arith.constant 1 : i32
    %21 = arith.index_cast %c1_i32 : i32 to index
    %c0_13 = arith.constant 0 : index
    %c0_14 = arith.constant 0 : index
    %22 = vector.load %arg8[%21, %c0_13, %c0_14] : memref<3x8x128xf32, #tpu.memory_space<vmem>>, vector<1x8x128xf32>
    %23 = vector.shape_cast %22 : vector<1x8x128xf32> to vector<8x128xf32>
    %24 = vector.shape_cast %20 : vector<8x128xf32> to vector<1x8x128xf32>
    tpu.vector_store %arg8[%21, %c0_13, %c0_14], %24 {strides = array<i32>} : memref<3x8x128xf32, #tpu.memory_space<vmem>>, vector<1x8x128xf32>,
    %25 = arith.index_cast %c1_i32 : i32 to index
    %c0_15 = arith.constant 0 : index
    %c0_16 = arith.constant 0 : index
    %26 = vector.load %arg3[%25, %c0_15, %c0_16] : memref<3x128x128xf32, #tpu.memory_space<vmem>>, vector<1x128x128xf32>
    %27 = vector.shape_cast %26 : vector<1x128x128xf32> to vector<128x128xf32>
    %cst_17 = arith.constant dense<0.000000e+00> : vector<8x128xf32>
    %28 = tpu.matmul %20, %27, %cst_17 {dimension_numbers = #tpu.dot_dimension_numbers<[1], [0], [0], [1], [0, 0, 1, 1], [], []>} : vector<8x128xf32>, vector<128x128xf32>, vector<8x128xf32> -> vector<8x128xf32>
    %29 = arith.index_cast %c1_i32 : i32 to index
    %c0_18 = arith.constant 0 : index
    %c0_19 = arith.constant 0 : index
    %30 = vector.load %arg4[%29, %c0_18, %c0_19] : memref<3x1x128xf32, #tpu.memory_space<vmem>>, vector<1x1x128xf32>
    %31 = vector.shape_cast %30 : vector<1x1x128xf32> to vector<1x128xf32>
    %32 = vector.broadcast %31 : vector<1x128xf32> to vector<8x128xf32>
    %33 = arith.addf %28, %32 : vector<8x128xf32>
    %cst_20 = arith.constant 0.000000e+00 : f32
    %34 = vector.broadcast %cst_20 : f32 to vector<8x128xf32>
    %35 = arith.maximumf %33, %34 : vector<8x128xf32>
    %c2_i32 = arith.constant 2 : i32
    %36 = arith.index_cast %c2_i32 : i32 to index
    %c0_21 = arith.constant 0 : index
    %c0_22 = arith.constant 0 : index
    %37 = vector.load %arg8[%36, %c0_21, %c0_22] : memref<3x8x128xf32, #tpu.memory_space<vmem>>, vector<1x8x128xf32>
    %38 = vector.shape_cast %37 : vector<1x8x128xf32> to vector<8x128xf32>
    %39 = vector.shape_cast %35 : vector<8x128xf32> to vector<1x8x128xf32>
    tpu.vector_store %arg8[%36, %c0_21, %c0_22], %39 {strides = array<i32>} : memref<3x8x128xf32, #tpu.memory_space<vmem>>, vector<1x8x128xf32>,
    %40 = arith.index_cast %c2_i32 : i32 to index
    %c0_23 = arith.constant 0 : index
    %c0_24 = arith.constant 0 : index
    %41 = vector.load %arg3[%40, %c0_23, %c0_24] : memref<3x128x128xf32, #tpu.memory_space<vmem>>, vector<1x128x128xf32>
    %42 = vector.shape_cast %41 : vector<1x128x128xf32> to vector<128x128xf32>
    %cst_25 = arith.constant dense<0.000000e+00> : vector<8x128xf32>
    %43 = tpu.matmul %35, %42, %cst_25 {dimension_numbers = #tpu.dot_dimension_numbers<[1], [0], [0], [1], [0, 0, 1, 1], [], []>} : vector<8x128xf32>, vector<128x128xf32>, vector<8x128xf32> -> vector<8x128xf32>
    %44 = arith.index_cast %c2_i32 : i32 to index
    %c0_26 = arith.constant 0 : index
    %c0_27 = arith.constant 0 : index
    %45 = vector.load %arg4[%44, %c0_26, %c0_27] : memref<3x1x128xf32, #tpu.memory_space<vmem>>, vector<1x1x128xf32>
    %46 = vector.shape_cast %45 : vector<1x1x128xf32> to vector<1x128xf32>
    %47 = vector.broadcast %46 : vector<1x128xf32> to vector<8x128xf32>
    %48 = arith.addf %43, %47 : vector<8x128xf32>
    %cst_28 = arith.constant 0.000000e+00 : f32
    %49 = vector.broadcast %cst_28 : f32 to vector<8x128xf32>
    %50 = arith.maximumf %48, %49 : vector<8x128xf32>
    %c3_i32 = arith.constant 3 : i32
    %c0_29 = arith.constant 0 : index
    %c0_30 = arith.constant 0 : index
    %51 = vector.load %arg5[%c0_29, %c0_30] : memref<128x128xf32, #tpu.memory_space<vmem>>, vector<128x128xf32>
    %cst_31 = arith.constant dense<0.000000e+00> : vector<8x128xf32>
    %52 = tpu.matmul %50, %51, %cst_31 {dimension_numbers = #tpu.dot_dimension_numbers<[1], [0], [0], [1], [0, 0, 1, 1], [], []>} : vector<8x128xf32>, vector<128x128xf32>, vector<8x128xf32> -> vector<8x128xf32>
    %c0_32 = arith.constant 0 : index
    %c0_33 = arith.constant 0 : index
    %53 = vector.load %arg6[%c0_32, %c0_33] : memref<1x128xf32, #tpu.memory_space<vmem>>, vector<1x128xf32>
    %54 = vector.broadcast %53 : vector<1x128xf32> to vector<8x128xf32>
    %55 = arith.addf %52, %54 : vector<8x128xf32>
    %c0_34 = arith.constant 0 : index
    %c0_35 = arith.constant 0 : index
    %56 = vector.load %arg7[%c0_34, %c0_35] : memref<8x128xf32, #tpu.memory_space<vmem>>, vector<8x128xf32>
    tpu.vector_store %arg7[%c0_34, %c0_35], %55 {strides = array<i32>} : memref<8x128xf32, #tpu.memory_space<vmem>>, vector<8x128xf32>,
    return
  }
}

</mosaic_0001>

<llo_original>
// kernel: tpu_custom_call.1
$region0: #{tpu_custom_call.1}
  #allocation0 [shape = 'u32[]', space=smem, size = 0x4, offset = 0x4, fixed_abs, tag = 'smem constant byte address 0x4 - core index']
  #allocation1 [shape = 'u32[144,128]{1,0:T(1,128)}', space=vmem, size = 0x12000, scoped, tag = 'internal scratch']
  %s0 = inlined_call_operand.hbm [shape: f32[8,128], index: 0, kind: input, shape index: {}]
  %s1 = inlined_call_operand.hbm [shape: f32[128,128], index: 1, kind: input, shape index: {}]
  %s2 = inlined_call_operand.vmem [shape: f32[1,128], index: 2, kind: input, shape index: {}]
  %s3 = inlined_call_operand.hbm [shape: f32[3,128,128], index: 3, kind: input, shape index: {}]
  %s4 = inlined_call_operand.vmem [shape: f32[3,1,128], index: 4, kind: input, shape index: {}]
  %s5 = inlined_call_operand.hbm [shape: f32[128,128], index: 5, kind: input, shape index: {}]
  %s6 = inlined_call_operand.vmem [shape: f32[1,128], index: 6, kind: input, shape index: {}]
  %s7 = inlined_call_operand.hbm [shape: f32[8,128], index: 7, kind: output, shape index: {0}]
  %s8 = inlined_call_operand.hbm [shape: f32[3,8,128], index: 8, kind: output, shape index: {1}]
  %9 = xla_tuple %s7, %s8
  %s10 = sld [smem:[#allocation0]]
  $region62: #{tpu_custom_call.1} parent=0
    _
  %s12 = ssub.s32 1, %s10
  %s13 = scalar_select 0, %s12, %s10
  $region1: #{tpu_custom_call.1} parent=0
    #allocation2 [shape = 'u8[4096]{0}', space=vmem, size = 0x1000, scoped, tag = 'input window, operand 0, single buffered']
    #allocation3 [shape = 's32[1]{0}', space=sflag, size = 0x4, scoped, tag = 'scoped memory for tpu_custom_call.1']
    #allocation4 [shape = 's32[1]{0}', space=sflag, size = 0x4, scoped, tag = 'scoped memory for tpu_custom_call.1']
    #allocation5 [shape = 'u8[65536]{0}', space=vmem, size = 0x10000, scoped, tag = 'input window, operand 1, single buffered']
    #allocation6 [shape = 's32[1]{0}', space=sflag, size = 0x4, scoped, tag = 'scoped memory for tpu_custom_call.1']
    #allocation7 [shape = 'u8[196608]{0}', space=vmem, size = 0x30000, scoped, tag = 'input window, operand 3, single buffered']
    #allocation8 [shape = 'u8[65536]{0}', space=vmem, size = 0x10000, scoped, tag = 'input window, operand 5, single buffered']
    #allocation9 [shape = 's32[1]{0}', space=sflag, size = 0x4, scoped, tag = 'scoped memory for tpu_custom_call.1']
    #allocation10 [shape = 'u8[4096]{0}', space=vmem, size = 0x1000, scoped, tag = 'output window, operand 0, single buffered']
    #allocation11 [shape = 'u8[12288]{0}', space=vmem, size = 0x3000, scoped, tag = 'output window, operand 1, single buffered']
    #allocation12 [shape = 's32[1]{0}', space=sflag, size = 0x4, scoped, tag = 'scoped memory for tpu_custom_call.1']
    %14 = vsyncpa [#allocation3], 0
    %15 = vsyncpa [#allocation6], 0
    %16 = vsyncpa [#allocation9], 0
    %17 = vsyncpa [#allocation4], 0
    %18 = vsyncpa [#allocation12], 0
    // Predicated region
    $region2: #{tpu_custom_call.1} parent=1 // pred_check
      _
    $region3: #{tpu_custom_call.1} parent=1 // pred_check_branch
      %20 = sbr.rel (0) target = $region5
    $region4: #{tpu_custom_call.1} parent=1 // pred_region
      %s22 = ssub.s32 128, 128
      %23 = vsyncadd [#allocation3], %s22
      %s25 = sshll.u32 [#allocation2], 4
      %s26 = int_to_ptr.vmem [resolvable:$true] %s25
      %28 = dma.hbm_to_vmem [thread:$0]  %s0, 128, %s26, [#allocation3]
    $region5: #{tpu_custom_call.1} parent=1 // pred_fallthru
      _
    // Predicated region
    $region6: #{tpu_custom_call.1} parent=1 // pred_check
      _
    $region7: #{tpu_custom_call.1} parent=1 // pred_check_branch
      %30 = sbr.rel (0) target = $region9
    $region8: #{tpu_custom_call.1} parent=1 // pred_region
      %s32 = ssub.s32 2048, 2048
      %33 = vsyncadd [#allocation6], %s32
      %s34 = sshll.u32 [#allocation5], 4
      %s35 = int_to_ptr.vmem [resolvable:$true] %s34
      %40 = dma.hbm_to_vmem [thread:$0]  %s1, 2048, %s35, [#allocation6], 128, 128, 8
    $region9: #{tpu_custom_call.1} parent=1 // pred_fallthru
      _
    // Predicated region
    $region10: #{tpu_custom_call.1} parent=1 // pred_check
      _
    $region11: #{tpu_custom_call.1} parent=1 // pred_check_branch
      %42 = sbr.rel (0) target = $region13
    $region12: #{tpu_custom_call.1} parent=1 // pred_region
      _
    $region13: #{tpu_custom_call.1} parent=1 // pred_fallthru
      _
    // Predicated region
    $region14: #{tpu_custom_call.1} parent=1 // pred_check
      _
    $region15: #{tpu_custom_call.1} parent=1 // pred_check_branch
      %44 = sbr.rel (0) target = $region17
    $region16: #{tpu_custom_call.1} parent=1 // pred_region
      %s46 = ssub.s32 6144, 6144
      %47 = vsyncadd [#allocation6], %s46
      %s48 = sshll.u32 [#allocation7], 4
      %s49 = int_to_ptr.vmem [resolvable:$true] %s48
      %54 = dma.hbm_to_vmem [thread:$0]  %s3, 6144, %s49, [#allocation6], 128, 128, 8
    $region17: #{tpu_custom_call.1} parent=1 // pred_fallthru
      _
    // Predicated region
    $region18: #{tpu_custom_call.1} parent=1 // pred_check
      _
    $region19: #{tpu_custom_call.1} parent=1 // pred_check_branch
      %56 = sbr.rel (0) target = $region21
    $region20: #{tpu_custom_call.1} parent=1 // pred_region
      _
    $region21: #{tpu_custom_call.1} parent=1 // pred_fallthru
      _
    // Predicated region
    $region22: #{tpu_custom_call.1} parent=1 // pred_check
      _
    $region23: #{tpu_custom_call.1} parent=1 // pred_check_branch
      %58 = sbr.rel (0) target = $region25
    $region24: #{tpu_custom_call.1} parent=1 // pred_region
      %s60 = ssub.s32 2048, 2048
      %61 = vsyncadd [#allocation9], %s60
      %s62 = sshll.u32 [#allocation8], 4
      %s63 = int_to_ptr.vmem [resolvable:$true] %s62
      %68 = dma.hbm_to_vmem [thread:$0]  %s5, 2048, %s63, [#allocation9], 128, 128, 8
    $region25: #{tpu_custom_call.1} parent=1 // pred_fallthru
      _
    // Predicated region
    $region26: #{tpu_custom_call.1} parent=1 // pred_check
      _
    $region27: #{tpu_custom_call.1} parent=1 // pred_check_branch
      %70 = sbr.rel (0) target = $region29
    $region28: #{tpu_custom_call.1} parent=1 // pred_region
      _
    $region29: #{tpu_custom_call.1} parent=1 // pred_fallthru
      _
    // Predicated region
    $region30: #{tpu_custom_call.1} parent=1 // pred_check
      _
    $region31: #{tpu_custom_call.1} parent=1 // pred_check_branch
      %72 = sbr.rel (0) target = $region33
    $region32: #{tpu_custom_call.1} parent=1 // pred_region
      %73 = dma.done [#allocation3], 128
    $region33: #{tpu_custom_call.1} parent=1 // pred_fallthru
      _
    // Predicated region
    $region34: #{tpu_custom_call.1} parent=1 // pred_check
      _
    $region35: #{tpu_custom_call.1} parent=1 // pred_check_branch
      %75 = sbr.rel (0) target = $region37
    $region36: #{tpu_custom_call.1} parent=1 // pred_region
      %76 = dma.done [#allocation6], 2048
    $region37: #{tpu_custom_call.1} parent=1 // pred_fallthru
      _
    // Predicated region
    $region38: #{tpu_custom_call.1} parent=1 // pred_check
      _
    $region39: #{tpu_custom_call.1} parent=1 // pred_check_branch
      %78 = sbr.rel (0) target = $region41
    $region40: #{tpu_custom_call.1} parent=1 // pred_region
      %79 = dma.done [#allocation6], 6144
    $region41: #{tpu_custom_call.1} parent=1 // pred_fallthru
      _
    // Predicated region
    $region42: #{tpu_custom_call.1} parent=1 // pred_check
      _
    $region43: #{tpu_custom_call.1} parent=1 // pred_check_branch
      %81 = sbr.rel (0) target = $region45
    $region44: #{tpu_custom_call.1} parent=1 // pred_region
      %82 = dma.done [#allocation9], 2048
    $region45: #{tpu_custom_call.1} parent=1 // pred_fallthru
      _
    %v83 = vld [vmem:[#allocation2] sm:$0xff]
    %v84 = vld [vmem:[#allocation5] sm:$0xff]
    %v85 = vld [vmem:[#allocation5 + $0x8] sm:$0xff]
    %v86 = vld [vmem:[#allocation5 + $0x10] sm:$0xff]
    %v87 = vld [vmem:[#allocation5 + $0x18] sm:$0xff]
    %v88 = vld [vmem:[#allocation5 + $0x20] sm:$0xff]
    %v89 = vld [vmem:[#allocation5 + $0x28] sm:$0xff]
    %v90 = vld [vmem:[#allocation5 + $0x30] sm:$0xff]
    %v91 = vld [vmem:[#allocation5 + $0x38] sm:$0xff]
    %v92 = vld [vmem:[#allocation5 + $0x40] sm:$0xff]
    %v93 = vld [vmem:[#allocation5 + $0x48] sm:$0xff]
    %v94 = vld [vmem:[#allocation5 + $0x50] sm:$0xff]
    %v95 = vld [vmem:[#allocation5 + $0x58] sm:$0xff]
    %v96 = vld [vmem:[#allocation5 + $0x60] sm:$0xff]
    %v97 = vld [vmem:[#allocation5 + $0x68] sm:$0xff]
    %v98 = vld [vmem:[#allocation5 + $0x70] sm:$0xff]
    %v99 = vld [vmem:[#allocation5 + $0x78] sm:$0xff]
    %v100 = vld [vmem:[%s2] sm:$0x1]
    %v102 = vlaneseq
    %v103 = vshrl.u32 %v102, 7
    %v104 = vsub.s32 0, %v103
    %v105 = vrot.slane %v100, %v104
    %107 = vmatprep.subr.mxu0 0.0
    %108 = vmatpush1.msra.mxu0 %v84
    %109 = vmatprep.subr.mxu0 0.0
    %110 = vmatpush1.msra.mxu0 %v85
    %111 = vmatprep.subr.mxu0 0.0
    %112 = vmatpush1.msra.mxu0 %v86
    %113 = vmatprep.subr.mxu0 0.0
    %114 = vmatpush1.msra.mxu0 %v87
    %115 = vmatprep.subr.mxu0 0.0
    %116 = vmatpush1.msra.mxu0 %v88
    %117 = vmatprep.subr.mxu0 0.0
    %118 = vmatpush1.msra.mxu0 %v89
    %119 = vmatprep.subr.mxu0 0.0
    %120 = vmatpush1.msra.mxu0 %v90
    %121 = vmatprep.subr.mxu0 0.0
    %122 = vmatpush1.msra.mxu0 %v91
    %123 = vmatprep.subr.mxu0 0.0
    %124 = vmatpush1.msra.mxu0 %v92
    %125 = vmatprep.subr.mxu0 0.0
    %126 = vmatpush1.msra.mxu0 %v93
    %127 = vmatprep.subr.mxu0 0.0
    %128 = vmatpush1.msra.mxu0 %v94
    %129 = vmatprep.subr.mxu0 0.0
    %130 = vmatpush1.msra.mxu0 %v95
    %131 = vmatprep.subr.mxu0 0.0
    %132 = vmatpush1.msra.mxu0 %v96
    %133 = vmatprep.subr.mxu0 0.0
    %134 = vmatpush1.msra.mxu0 %v97
    %135 = vmatprep.subr.mxu0 0.0
    %136 = vmatpush1.msra.mxu0 %v98
    %137 = vmatprep.subr.mxu0 0.0
    %138 = vmatpush1.msra.mxu0 %v99
    %139 = vmatprep.subr.mxu0 0.0
    %140 = vmatpush1.msra.mxu0 0.0
    %141 = vmatprep.subr.mxu0 0.0
    %142 = vmatpush1.msra.mxu0 0.0
    %143 = vmatprep.subr.mxu0 0.0
    %144 = vmatpush1.msra.mxu0 0.0
    %145 = vmatprep.subr.mxu0 0.0
    %146 = vmatpush1.msra.mxu0 0.0
    %147 = vmatprep.subr.mxu0 0.0
    %148 = vmatpush1.msra.mxu0 0.0
    %149 = vmatprep.subr.mxu0 0.0
    %150 = vmatpush1.msra.mxu0 0.0
    %151 = vmatprep.subr.mxu0 0.0
    %152 = vmatpush1.msra.mxu0 0.0
    %153 = vmatprep.subr.mxu0 0.0
    %154 = vmatpush1.msra.mxu0 0.0
    %155 = vmatprep.subr.mxu0 0.0
    %156 = vmatpush1.msra.mxu0 0.0
    %157 = vmatprep.subr.mxu0 0.0
    %158 = vmatpush1.msra.mxu0 0.0
    %159 = vmatprep.subr.mxu0 0.0
    %160 = vmatpush1.msra.mxu0 0.0
    %161 = vmatprep.subr.mxu0 0.0
    %162 = vmatpush1.msra.mxu0 0.0
    %163 = vmatprep.subr.mxu0 0.0
    %164 = vmatpush1.msra.mxu0 0.0
    %165 = vmatprep.subr.mxu0 0.0
    %166 = vmatpush1.msra.mxu0 0.0
    %167 = vmatprep.subr.mxu0 0.0
    %168 = vmatpush1.msra.mxu0 0.0
    %169 = vmatprep.subr.mxu0 0.0
    %170 = vmatpush1.msra.mxu0 0.0
    %171 = vmatprep.mubr.f32.mxu0 0.0
    %172 = vmatmul.mubr.f32.gmra.mrb[0].mxu0 %v83
    %v173 = vpop.f32.mrb[0].mxu0
    %v174 = vadd.f32 %v105, %v173
    %v175 = vpop.f32.mrb[0].mxu0
    %176 = vdwg.mxu0
    %177 = vst [vmem:[#allocation11] sm:$0xff] %v174
    %v178 = vld [vmem:[#allocation7] sm:$0xff]
    %v179 = vld [vmem:[#allocation7 + $0x8] sm:$0xff]
    %v180 = vld [vmem:[#allocation7 + $0x10] sm:$0xff]
    %v181 = vld [vmem:[#allocation7 + $0x18] sm:$0xff]
    %v182 = vld [vmem:[#allocation7 + $0x20] sm:$0xff]
    %v183 = vld [vmem:[#allocation7 + $0x28] sm:$0xff]
    %v184 = vld [vmem:[#allocation7 + $0x30] sm:$0xff]
    %v185 = vld [vmem:[#allocation7 + $0x38] sm:$0xff]
    %v186 = vld [vmem:[#allocation7 + $0x40] sm:$0xff]
    %v187 = vld [vmem:[#allocation7 + $0x48] sm:$0xff]
    %v188 = vld [vmem:[#allocation7 + $0x50] sm:$0xff]
    %v189 = vld [vmem:[#allocation7 + $0x58] sm:$0xff]
    %v190 = vld [vmem:[#allocation7 + $0x60] sm:$0xff]
    %v191 = vld [vmem:[#allocation7 + $0x68] sm:$0xff]
    %v192 = vld [vmem:[#allocation7 + $0x70] sm:$0xff]
    %v193 = vld [vmem:[#allocation7 + $0x78] sm:$0xff]
    %v194 = vld [vmem:[%s4] sm:$0x1]
    %v196 = vlaneseq
    %v197 = vshrl.u32 %v196, 7
    %v198 = vsub.s32 0, %v197
    %v199 = vrot.slane %v194, %v198
    %201 = vmatprep.subr.mxu0 0.0
    %202 = vmatpush1.msra.mxu0 %v178
    %203 = vmatprep.subr.mxu0 0.0
    %204 = vmatpush1.msra.mxu0 %v179
    %205 = vmatprep.subr.mxu0 0.0
    %206 = vmatpush1.msra.mxu0 %v180
    %207 = vmatprep.subr.mxu0 0.0
    %208 = vmatpush1.msra.mxu0 %v181
    %209 = vmatprep.subr.mxu0 0.0
    %210 = vmatpush1.msra.mxu0 %v182
    %211 = vmatprep.subr.mxu0 0.0
    %212 = vmatpush1.msra.mxu0 %v183
    %213 = vmatprep.subr.mxu0 0.0
    %214 = vmatpush1.msra.mxu0 %v184
    %215 = vmatprep.subr.mxu0 0.0
    %216 = vmatpush1.msra.mxu0 %v185
    %217 = vmatprep.subr.mxu0 0.0
    %218 = vmatpush1.msra.mxu0 %v186
    %219 = vmatprep.subr.mxu0 0.0
    %220 = vmatpush1.msra.mxu0 %v187
    %221 = vmatprep.subr.mxu0 0.0
    %222 = vmatpush1.msra.mxu0 %v188
    %223 = vmatprep.subr.mxu0 0.0
    %224 = vmatpush1.msra.mxu0 %v189
    %225 = vmatprep.subr.mxu0 0.0
    %226 = vmatpush1.msra.mxu0 %v190
    %227 = vmatprep.subr.mxu0 0.0
    %228 = vmatpush1.msra.mxu0 %v191
    %229 = vmatprep.subr.mxu0 0.0
    %230 = vmatpush1.msra.mxu0 %v192
    %231 = vmatprep.subr.mxu0 0.0
    %232 = vmatpush1.msra.mxu0 %v193
    %233 = vmatprep.subr.mxu0 0.0
    %234 = vmatpush1.msra.mxu0 0.0
    %235 = vmatprep.subr.mxu0 0.0
    %236 = vmatpush1.msra.mxu0 0.0
    %237 = vmatprep.subr.mxu0 0.0
    %238 = vmatpush1.msra.mxu0 0.0
    %239 = vmatprep.subr.mxu0 0.0
    %240 = vmatpush1.msra.mxu0 0.0
    %241 = vmatprep.subr.mxu0 0.0
    %242 = vmatpush1.msra.mxu0 0.0
    %243 = vmatprep.subr.mxu0 0.0
    %244 = vmatpush1.msra.mxu0 0.0
    %245 = vmatprep.subr.mxu0 0.0
    %246 = vmatpush1.msra.mxu0 0.0
    %247 = vmatprep.subr.mxu0 0.0
    %248 = vmatpush1.msra.mxu0 0.0
    %249 = vmatprep.subr.mxu0 0.0
    %250 = vmatpush1.msra.mxu0 0.0
    %251 = vmatprep.subr.mxu0 0.0
    %252 = vmatpush1.msra.mxu0 0.0
    %253 = vmatprep.subr.mxu0 0.0
    %254 = vmatpush1.msra.mxu0 0.0
    %255 = vmatprep.subr.mxu0 0.0
    %256 = vmatpush1.msra.mxu0 0.0
    %257 = vmatprep.subr.mxu0 0.0
    %258 = vmatpush1.msra.mxu0 0.0
    %259 = vmatprep.subr.mxu0 0.0
    %260 = vmatpush1.msra.mxu0 0.0
    %261 = vmatprep.subr.mxu0 0.0
    %262 = vmatpush1.msra.mxu0 0.0
    %263 = vmatprep.subr.mxu0 0.0
    %264 = vmatpush1.msra.mxu0 0.0
    %265 = vmatprep.mubr.f32.mxu0 0.0
    %266 = vmatmul.mubr.f32.gmra.mrb[0].mxu0 %v174
    %v267 = vpop.f32.mrb[0].mxu0
    %v268 = vadd.f32 %v199, %v267
    %v269 = vpop.f32.mrb[0].mxu0
    %270 = vdwg.mxu0
    %v271 = vmax.f32 %v268, 0.0
    %s272 = scalar_lea.vmem [#allocation11], 8
    %273 = vst [vmem:[%s272] sm:$0xff] %v271
    %s274 = scalar_lea.vmem [#allocation7], 128
    %v275 = vld [vmem:[%s274] sm:$0xff]
    %v276 = vld [vmem:[%s274 + $0x8] sm:$0xff]
    %v277 = vld [vmem:[%s274 + $0x10] sm:$0xff]
    %v278 = vld [vmem:[%s274 + $0x18] sm:$0xff]
    %v279 = vld [vmem:[%s274 + $0x20] sm:$0xff]
    %v280 = vld [vmem:[%s274 + $0x28] sm:$0xff]
    %v281 = vld [vmem:[%s274 + $0x30] sm:$0xff]
    %v282 = vld [vmem:[%s274 + $0x38] sm:$0xff]
    %v283 = vld [vmem:[%s274 + $0x40] sm:$0xff]
    %v284 = vld [vmem:[%s274 + $0x48] sm:$0xff]
    %v285 = vld [vmem:[%s274 + $0x50] sm:$0xff]
    %v286 = vld [vmem:[%s274 + $0x58] sm:$0xff]
    %v287 = vld [vmem:[%s274 + $0x60] sm:$0xff]
    %v288 = vld [vmem:[%s274 + $0x68] sm:$0xff]
    %v289 = vld [vmem:[%s274 + $0x70] sm:$0xff]
    %v290 = vld [vmem:[%s274 + $0x78] sm:$0xff]
    %s291 = scalar_lea.vmem %s4, 1
    %v292 = vld [vmem:[%s291] sm:$0x1]
    %v294 = vlaneseq
    %v295 = vshrl.u32 %v294, 7
    %v296 = vsub.s32 0, %v295
    %v297 = vrot.slane %v292, %v296
    %299 = vmatprep.subr.mxu0 0.0
    %300 = vmatpush1.msra.mxu0 %v275
    %301 = vmatprep.subr.mxu0 0.0
    %302 = vmatpush1.msra.mxu0 %v276
    %303 = vmatprep.subr.mxu0 0.0
    %304 = vmatpush1.msra.mxu0 %v277
    %305 = vmatprep.subr.mxu0 0.0
    %306 = vmatpush1.msra.mxu0 %v278
    %307 = vmatprep.subr.mxu0 0.0
    %308 = vmatpush1.msra.mxu0 %v279
    %309 = vmatprep.subr.mxu0 0.0
    %310 = vmatpush1.msra.mxu0 %v280
    %311 = vmatprep.subr.mxu0 0.0
    %312 = vmatpush1.msra.mxu0 %v281
    %313 = vmatprep.subr.mxu0 0.0
    %314 = vmatpush1.msra.mxu0 %v282
    %315 = vmatprep.subr.mxu0 0.0
    %316 = vmatpush1.msra.mxu0 %v283
    %317 = vmatprep.subr.mxu0 0.0
    %318 = vmatpush1.msra.mxu0 %v284
    %319 = vmatprep.subr.mxu0 0.0
    %320 = vmatpush1.msra.mxu0 %v285
    %321 = vmatprep.subr.mxu0 0.0
    %322 = vmatpush1.msra.mxu0 %v286
    %323 = vmatprep.subr.mxu0 0.0
    %324 = vmatpush1.msra.mxu0 %v287
    %325 = vmatprep.subr.mxu0 0.0
    %326 = vmatpush1.msra.mxu0 %v288
    %327 = vmatprep.subr.mxu0 0.0
    %328 = vmatpush1.msra.mxu0 %v289
    %329 = vmatprep.subr.mxu0 0.0
    %330 = vmatpush1.msra.mxu0 %v290
    %331 = vmatprep.subr.mxu0 0.0
    %332 = vmatpush1.msra.mxu0 0.0
    %333 = vmatprep.subr.mxu0 0.0
    %334 = vmatpush1.msra.mxu0 0.0
    %335 = vmatprep.subr.mxu0 0.0
    %336 = vmatpush1.msra.mxu0 0.0
    %337 = vmatprep.subr.mxu0 0.0
    %338 = vmatpush1.msra.mxu0 0.0
    %339 = vmatprep.subr.mxu0 0.0
    %340 = vmatpush1.msra.mxu0 0.0
    %341 = vmatprep.subr.mxu0 0.0
    %342 = vmatpush1.msra.mxu0 0.0
    %343 = vmatprep.subr.mxu0 0.0
    %344 = vmatpush1.msra.mxu0 0.0
    %345 = vmatprep.subr.mxu0 0.0
    %346 = vmatpush1.msra.mxu0 0.0
    %347 = vmatprep.subr.mxu0 0.0
    %348 = vmatpush1.msra.mxu0 0.0
    %349 = vmatprep.subr.mxu0 0.0
    %350 = vmatpush1.msra.mxu0 0.0
    %351 = vmatprep.subr.mxu0 0.0
    %352 = vmatpush1.msra.mxu0 0.0
    %353 = vmatprep.subr.mxu0 0.0
    %354 = vmatpush1.msra.mxu0 0.0
    %355 = vmatprep.subr.mxu0 0.0
    %356 = vmatpush1.msra.mxu0 0.0
    %357 = vmatprep.subr.mxu0 0.0
    %358 = vmatpush1.msra.mxu0 0.0
    %359 = vmatprep.subr.mxu0 0.0
    %360 = vmatpush1.msra.mxu0 0.0
    %361 = vmatprep.subr.mxu0 0.0
    %362 = vmatpush1.msra.mxu0 0.0
    %363 = vmatprep.mubr.f32.mxu0 0.0
    %364 = vmatmul.mubr.f32.gmra.mrb[0].mxu0 %v271
    %v365 = vpop.f32.mrb[0].mxu0
    %v366 = vadd.f32 %v297, %v365
    %v367 = vpop.f32.mrb[0].mxu0
    %368 = vdwg.mxu0
    %v369 = vmax.f32 %v366, 0.0
    %s370 = scalar_lea.vmem [#allocation11], 16
    %371 = vst [vmem:[%s370] sm:$0xff] %v369
    %s372 = scalar_lea.vmem [#allocation7], 256
    %v373 = vld [vmem:[%s372] sm:$0xff]
    %v374 = vld [vmem:[%s372 + $0x8] sm:$0xff]
    %v375 = vld [vmem:[%s372 + $0x10] sm:$0xff]
    %v376 = vld [vmem:[%s372 + $0x18] sm:$0xff]
    %v377 = vld [vmem:[%s372 + $0x20] sm:$0xff]
    %v378 = vld [vmem:[%s372 + $0x28] sm:$0xff]
    %v379 = vld [vmem:[%s372 + $0x30] sm:$0xff]
    %v380 = vld [vmem:[%s372 + $0x38] sm:$0xff]
    %v381 = vld [vmem:[%s372 + $0x40] sm:$0xff]
    %v382 = vld [vmem:[%s372 + $0x48] sm:$0xff]
    %v383 = vld [vmem:[%s372 + $0x50] sm:$0xff]
    %v384 = vld [vmem:[%s372 + $0x58] sm:$0xff]
    %v385 = vld [vmem:[%s372 + $0x60] sm:$0xff]
    %v386 = vld [vmem:[%s372 + $0x68] sm:$0xff]
    %v387 = vld [vmem:[%s372 + $0x70] sm:$0xff]
    %v388 = vld [vmem:[%s372 + $0x78] sm:$0xff]
    %s389 = scalar_lea.vmem %s4, 2
    %v390 = vld [vmem:[%s389] sm:$0x1]
    %v392 = vlaneseq
    %v393 = vshrl.u32 %v392, 7
    %v394 = vsub.s32 0, %v393
    %v395 = vrot.slane %v390, %v394
    %397 = vmatprep.subr.mxu0 0.0
    %398 = vmatpush1.msra.mxu0 %v373
    %399 = vmatprep.subr.mxu0 0.0
    %400 = vmatpush1.msra.mxu0 %v374
    %401 = vmatprep.subr.mxu0 0.0
    %402 = vmatpush1.msra.mxu0 %v375
    %403 = vmatprep.subr.mxu0 0.0
    %404 = vmatpush1.msra.mxu0 %v376
    %405 = vmatprep.subr.mxu0 0.0
    %406 = vmatpush1.msra.mxu0 %v377
    %407 = vmatprep.subr.mxu0 0.0
    %408 = vmatpush1.msra.mxu0 %v378
    %409 = vmatprep.subr.mxu0 0.0
    %410 = vmatpush1.msra.mxu0 %v379
    %411 = vmatprep.subr.mxu0 0.0
    %412 = vmatpush1.msra.mxu0 %v380
    %413 = vmatprep.subr.mxu0 0.0
    %414 = vmatpush1.msra.mxu0 %v381
    %415 = vmatprep.subr.mxu0 0.0
    %416 = vmatpush1.msra.mxu0 %v382
    %417 = vmatprep.subr.mxu0 0.0
    %418 = vmatpush1.msra.mxu0 %v383
    %419 = vmatprep.subr.mxu0 0.0
    %420 = vmatpush1.msra.mxu0 %v384
    %421 = vmatprep.subr.mxu0 0.0
    %422 = vmatpush1.msra.mxu0 %v385
    %423 = vmatprep.subr.mxu0 0.0
    %424 = vmatpush1.msra.mxu0 %v386
    %425 = vmatprep.subr.mxu0 0.0
    %426 = vmatpush1.msra.mxu0 %v387
    %427 = vmatprep.subr.mxu0 0.0
    %428 = vmatpush1.msra.mxu0 %v388
    %429 = vmatprep.subr.mxu0 0.0
    %430 = vmatpush1.msra.mxu0 0.0
    %431 = vmatprep.subr.mxu0 0.0
    %432 = vmatpush1.msra.mxu0 0.0
    %433 = vmatprep.subr.mxu0 0.0
    %434 = vmatpush1.msra.mxu0 0.0
    %435 = vmatprep.subr.mxu0 0.0
    %436 = vmatpush1.msra.mxu0 0.0
    %437 = vmatprep.subr.mxu0 0.0
    %438 = vmatpush1.msra.mxu0 0.0
    %439 = vmatprep.subr.mxu0 0.0
    %440 = vmatpush1.msra.mxu0 0.0
    %441 = vmatprep.subr.mxu0 0.0
    %442 = vmatpush1.msra.mxu0 0.0
    %443 = vmatprep.subr.mxu0 0.0
    %444 = vmatpush1.msra.mxu0 0.0
    %445 = vmatprep.subr.mxu0 0.0
    %446 = vmatpush1.msra.mxu0 0.0
    %447 = vmatprep.subr.mxu0 0.0
    %448 = vmatpush1.msra.mxu0 0.0
    %449 = vmatprep.subr.mxu0 0.0
    %450 = vmatpush1.msra.mxu0 0.0
    %451 = vmatprep.subr.mxu0 0.0
    %452 = vmatpush1.msra.mxu0 0.0
    %453 = vmatprep.subr.mxu0 0.0
    %454 = vmatpush1.msra.mxu0 0.0
    %455 = vmatprep.subr.mxu0 0.0
    %456 = vmatpush1.msra.mxu0 0.0
    %457 = vmatprep.subr.mxu0 0.0
    %458 = vmatpush1.msra.mxu0 0.0
    %459 = vmatprep.subr.mxu0 0.0
    %460 = vmatpush1.msra.mxu0 0.0
    %461 = vmatprep.mubr.f32.mxu0 0.0
    %462 = vmatmul.mubr.f32.gmra.mrb[0].mxu0 %v369
    %v463 = vpop.f32.mrb[0].mxu0
    %v464 = vadd.f32 %v395, %v463
    %v465 = vpop.f32.mrb[0].mxu0
    %466 = vdwg.mxu0
    %v467 = vmax.f32 %v464, 0.0
    %v468 = vld [vmem:[#allocation8] sm:$0xff]
    %v469 = vld [vmem:[#allocation8 + $0x8] sm:$0xff]
    %v470 = vld [vmem:[#allocation8 + $0x10] sm:$0xff]
    %v471 = vld [vmem:[#allocation8 + $0x18] sm:$0xff]
    %v472 = vld [vmem:[#allocation8 + $0x20] sm:$0xff]
    %v473 = vld [vmem:[#allocation8 + $0x28] sm:$0xff]
    %v474 = vld [vmem:[#allocation8 + $0x30] sm:$0xff]
    %v475 = vld [vmem:[#allocation8 + $0x38] sm:$0xff]
    %v476 = vld [vmem:[#allocation8 + $0x40] sm:$0xff]
    %v477 = vld [vmem:[#allocation8 + $0x48] sm:$0xff]
    %v478 = vld [vmem:[#allocation8 + $0x50] sm:$0xff]
    %v479 = vld [vmem:[#allocation8 + $0x58] sm:$0xff]
    %v480 = vld [vmem:[#allocation8 + $0x60] sm:$0xff]
    %v481 = vld [vmem:[#allocation8 + $0x68] sm:$0xff]
    %v482 = vld [vmem:[#allocation8 + $0x70] sm:$0xff]
    %v483 = vld [vmem:[#allocation8 + $0x78] sm:$0xff]
    %v484 = vld [vmem:[%s6] sm:$0x1]
    %v486 = vlaneseq
    %v487 = vshrl.u32 %v486, 7
    %v488 = vsub.s32 0, %v487
    %v489 = vrot.slane %v484, %v488
    %491 = vmatprep.subr.mxu0 0.0
    %492 = vmatpush1.msra.mxu0 %v468
    %493 = vmatprep.subr.mxu0 0.0
    %494 = vmatpush1.msra.mxu0 %v469
    %495 = vmatprep.subr.mxu0 0.0
    %496 = vmatpush1.msra.mxu0 %v470
    %497 = vmatprep.subr.mxu0 0.0
    %498 = vmatpush1.msra.mxu0 %v471
    %499 = vmatprep.subr.mxu0 0.0
    %500 = vmatpush1.msra.mxu0 %v472
    %501 = vmatprep.subr.mxu0 0.0
    %502 = vmatpush1.msra.mxu0 %v473
    %503 = vmatprep.subr.mxu0 0.0
    %504 = vmatpush1.msra.mxu0 %v474
    %505 = vmatprep.subr.mxu0 0.0
    %506 = vmatpush1.msra.mxu0 %v475
    %507 = vmatprep.subr.mxu0 0.0
    %508 = vmatpush1.msra.mxu0 %v476
    %509 = vmatprep.subr.mxu0 0.0
    %510 = vmatpush1.msra.mxu0 %v477
    %511 = vmatprep.subr.mxu0 0.0
    %512 = vmatpush1.msra.mxu0 %v478
    %513 = vmatprep.subr.mxu0 0.0
    %514 = vmatpush1.msra.mxu0 %v479
    %515 = vmatprep.subr.mxu0 0.0
    %516 = vmatpush1.msra.mxu0 %v480
    %517 = vmatprep.subr.mxu0 0.0
    %518 = vmatpush1.msra.mxu0 %v481
    %519 = vmatprep.subr.mxu0 0.0
    %520 = vmatpush1.msra.mxu0 %v482
    %521 = vmatprep.subr.mxu0 0.0
    %522 = vmatpush1.msra.mxu0 %v483
    %523 = vmatprep.subr.mxu0 0.0
    %524 = vmatpush1.msra.mxu0 0.0
    %525 = vmatprep.subr.mxu0 0.0
    %526 = vmatpush1.msra.mxu0 0.0
    %527 = vmatprep.subr.mxu0 0.0
    %528 = vmatpush1.msra.mxu0 0.0
    %529 = vmatprep.subr.mxu0 0.0
    %530 = vmatpush1.msra.mxu0 0.0
    %531 = vmatprep.subr.mxu0 0.0
    %532 = vmatpush1.msra.mxu0 0.0
    %533 = vmatprep.subr.mxu0 0.0
    %534 = vmatpush1.msra.mxu0 0.0
    %535 = vmatprep.subr.mxu0 0.0
    %536 = vmatpush1.msra.mxu0 0.0
    %537 = vmatprep.subr.mxu0 0.0
    %538 = vmatpush1.msra.mxu0 0.0
    %539 = vmatprep.subr.mxu0 0.0
    %540 = vmatpush1.msra.mxu0 0.0
    %541 = vmatprep.subr.mxu0 0.0
    %542 = vmatpush1.msra.mxu0 0.0
    %543 = vmatprep.subr.mxu0 0.0
    %544 = vmatpush1.msra.mxu0 0.0
    %545 = vmatprep.subr.mxu0 0.0
    %546 = vmatpush1.msra.mxu0 0.0
    %547 = vmatprep.subr.mxu0 0.0
    %548 = vmatpush1.msra.mxu0 0.0
    %549 = vmatprep.subr.mxu0 0.0
    %550 = vmatpush1.msra.mxu0 0.0
    %551 = vmatprep.subr.mxu0 0.0
    %552 = vmatpush1.msra.mxu0 0.0
    %553 = vmatprep.subr.mxu0 0.0
    %554 = vmatpush1.msra.mxu0 0.0
    %555 = vmatprep.mubr.f32.mxu0 0.0
    %556 = vmatmul.mubr.f32.gmra.mrb[0].mxu0 %v467
    %v557 = vpop.f32.mrb[0].mxu0
    %v558 = vadd.f32 %v489, %v557
    %v559 = vpop.f32.mrb[0].mxu0
    %560 = vdwg.mxu0
    %561 = vst [vmem:[#allocation10] sm:$0xff] %v558
    // Predicated region
    $region46: #{tpu_custom_call.1} parent=1 // pred_check
      _
    $region47: #{tpu_custom_call.1} parent=1 // pred_check_branch
      %563 = sbr.rel (0) target = $region49
    $region48: #{tpu_custom_call.1} parent=1 // pred_region
      %s565 = ssub.s32 128, 128
      %566 = vsyncadd [#allocation4], %s565
      %s568 = sshll.u32 [#allocation10], 4
      %s569 = int_to_ptr.vmem [resolvable:$true] %s568
      %571 = dma.vmem_to_hbm [thread:$0]  %s569, 128, %s7, [#allocation4]
    $region49: #{tpu_custom_call.1} parent=1 // pred_fallthru
      _
    // Predicated region
    $region50: #{tpu_custom_call.1} parent=1 // pred_check
      _
    $region51: #{tpu_custom_call.1} parent=1 // pred_check_branch
      %573 = sbr.rel (0) target = $region53
    $region52: #{tpu_custom_call.1} parent=1 // pred_region
      %s575 = ssub.s32 384, 384
      %576 = vsyncadd [#allocation12], %s575
      %s577 = sshll.u32 [#allocation11], 4
      %s578 = int_to_ptr.vmem [resolvable:$true] %s577
      %583 = dma.vmem_to_hbm [thread:$0]  %s578, 384, %s8, [#allocation12], 128, 128, 8
    $region53: #{tpu_custom_call.1} parent=1 // pred_fallthru
      _
    // Predicated region
    $region54: #{tpu_custom_call.1} parent=1 // pred_check
      _
    $region55: #{tpu_custom_call.1} parent=1 // pred_check_branch
      %585 = sbr.rel (0) target = $region57
    $region56: #{tpu_custom_call.1} parent=1 // pred_region
      %586 = dma.done [#allocation4], 128
    $region57: #{tpu_custom_call.1} parent=1 // pred_fallthru
      _
    // Predicated region
    $region58: #{tpu_custom_call.1} parent=1 // pred_check
      _
    $region59: #{tpu_custom_call.1} parent=1 // pred_check_branch
      %588 = sbr.rel (0) target = $region61
    $region60: #{tpu_custom_call.1} parent=1 // pred_region
      %589 = dma.done [#allocation12], 384
    $region61: #{tpu_custom_call.1} parent=1 // pred_fallthru
      _
    %590 = vsyncpa [#allocation3], 1
    %591 = vsyncpa [#allocation6], 1
    %592 = vsyncpa [#allocation9], 1
    %593 = vsyncpa [#allocation4], 1
    %594 = vsyncpa [#allocation12], 1

</llo_original>
